<compile_context>
chip_gen: v7x
topology: tpu7x:2x2x1
jax: 0.10.0
libtpu: 0.0.40
codegen_flags: <defaults>
</compile_context>

<pallas_src>
import functools

import jax
import jax.numpy as jnp
from jax.experimental import pallas as pl
from jax.experimental.pallas import tpu as pltpu


def _round_up(a: int, b: int) -> int:
    return (a + b - 1) // b * b


def _vmem_budget_bytes() -> int:
    """Generation-aware VMEM budget for tile sizing / vmem_limit_bytes."""
    try:
        kind = jax.devices()[0].device_kind.lower()
    except Exception:
        kind = ""
    if "v5" in kind or "v6" in kind:
        return 100 * 1024 * 1024      # 128 MiB physical VMEM on v5e / v6e
    return 48 * 1024 * 1024           # conservative: 64 MiB physical on v7x


def _pick_tile(M: int, D: int, H: int, vmem_budget: int, tm_cap: int = 1024) -> int:
    """Largest row tile that fits the VMEM budget (double-buffered f32 in/out
    tiles + resident bf16 weight), multiple of 128 when large, and small enough
    that the parallel row grid has >= 2 steps (v7x dual-TC sharding)."""
    bytes_per_row = 2 * (D * 4) + 2 * (D * 4)               # in + out, x2 buffers
    resident = 2 * (H * 2 * H * 2 + 2 * H * 4 + D * 4)      # bf16 W + f32 b + i32 perm
    slack = 4 * 1024 * 1024
    avail = max(vmem_budget - resident - slack, 8 * bytes_per_row)
    tm = min(tm_cap, avail // bytes_per_row)
    tm = min(tm, _round_up(M, 8))
    if M > 8:
        # >= 2 grid steps so the "parallel" axis shards across both v7x TCs.
        tm = min(tm, _round_up(pl.cdiv(M, 2), 8))
    if tm >= 128:
        tm = (tm // 128) * 128
    else:
        tm = (tm // 8) * 8
    return max(int(tm), 8)


def _coupling_kernel(x_ref, w_ref, b_ref, perm_ref, out_ref, *, h, fuse_perm):
    """out = shuffle(concat([x1, x2 * scale(x1) + translate(x1)], -1)).

    The two Linear(H, H) layers are fused into one (H, 2H) bf16 matmul with f32
    accumulation; the shuffle is a static lane permutation applied in-kernel
    when fuse_perm=True (XLU work, idle slot on this mem-bound kernel).
    """
    x1 = x_ref[:, :h]                       # static slices of the full row tile
    x2 = x_ref[:, h:]
    st = jnp.dot(x1.astype(w_ref.dtype), w_ref[...],
                 preferred_element_type=jnp.float32) + b_ref[...]
    scale = st[:, :h]
    translate = st[:, h:]
    z2 = x2.astype(jnp.float32) * scale + translate        # f32 VPU math (v5e-safe)
    cat = jnp.concatenate([x1.astype(jnp.float32), z2], axis=1)
    if fuse_perm:
        idx = jnp.broadcast_to(perm_ref[...], cat.shape)
        cat = jnp.take_along_axis(cat, idx, axis=1, mode="promise_in_bounds")
    out_ref[...] = cat.astype(out_ref.dtype)


@functools.partial(jax.jit, static_argnames=("tm", "fuse_perm"))
def _forward_impl(x, w_cat, b_cat, perm_row, *, tm, fuse_perm):
    B, S, D = x.shape
    H = D // 2
    M = B * S
    xf = x.reshape(M, D)                    # free reshape, no HBM pass

    grid = (pl.cdiv(M, tm),)                # ragged last block, no jnp.pad
    kernel = functools.partial(_coupling_kernel, h=H, fuse_perm=fuse_perm)

    out = pl.pallas_call(
        kernel,
        out_shape=jax.ShapeDtypeStruct((M, D), x.dtype),
        grid=grid,
        in_specs=[
            pl.BlockSpec((tm, D), lambda i: (i, 0)),        # full-width row tile
            pl.BlockSpec((H, 2 * H), lambda i: (0, 0)),     # fused bf16 weight (resident)
            pl.BlockSpec((1, 2 * H), lambda i: (0, 0)),     # fused f32 bias (resident)
            pl.BlockSpec((1, D), lambda i: (0, 0)),         # shuffle indices (resident)
        ],
        out_specs=pl.BlockSpec((tm, D), lambda i: (i, 0)),  # lane-dense width-D output
        compiler_params=pltpu.CompilerParams(
            dimension_semantics=("parallel",),              # shards rows across v7x TCs
            vmem_limit_bytes=_vmem_budget_bytes(),
        ),
    )(xf, w_cat, b_cat, perm_row)

    if not fuse_perm:
        # Fallback: the static shuffle as a single gather outside the kernel.
        out = jnp.take(out, perm_row[0], axis=-1)
    return out.reshape(B, S, D)


def invertable_scale_and_translate_forward(x, w_cat, b_cat, perm, *, tm=None):
    """x: (B, S, D). w_cat: (H, 2H) fused [scale | translate] weight (in, out),
    ideally pre-cast to bf16. b_cat: (1, 2H) f32 fused bias. perm: (D,) shuffle
    indices. Returns shuffle(concat([x1, x2*scale(x1)+translate(x1)], -1))."""
    B, S, D = x.shape
    H = D // 2
    M = B * S
    if tm is None:
        tm = _pick_tile(M, D, H, _vmem_budget_bytes())
    perm_row = jnp.asarray(perm, dtype=jnp.int32).reshape(1, D)
    try:
        out = _forward_impl(x, w_cat, b_cat, perm_row, tm=tm, fuse_perm=True)
        return jax.block_until_ready(out)
    except Exception:
        # TODO(synk): in-kernel lane gather (take_along_axis -> dynamic_gather)
        # unsupported by this jax/libtpu build; keep the shuffle as one fused
        # gather in the wrapper instead.
        out = _forward_impl(x, w_cat, b_cat, perm_row, tm=tm, fuse_perm=False)
        return jax.block_until_ready(out)


def _reference_forward(x, w_cat, b_cat, perm):
    """Pure-JAX reference mirroring the PyTorch forward pass.  Given a bf16
    w_cat it uses the same matmul operand dtypes as the kernel."""
    D = x.shape[-1]
    H = D // 2
    x1, x2 = x[..., :H], x[..., H:]
    st = jnp.dot(x1.astype(w_cat.dtype), w_cat,
                 preferred_element_type=jnp.float32) + b_cat[0]
    z2 = x2 * st[..., :H] + st[..., H:]
    concat = jnp.concatenate([x1, z2], axis=-1)
    return jnp.take(concat, perm, axis=-1)


if __name__ == "__main__":
    # Small shapes consistent with the module: (batch, seq, hidden), hidden even.
    B, S, D = 2, 8, 32
    H = D // 2

    key = jax.random.PRNGKey(0)
    k_x, k_ws, k_bs, k_wt, k_bt, k_perm = jax.random.split(key, 6)

    x = jax.random.normal(k_x, (B, S, D), dtype=jnp.float32)

    # Deterministic "Linear(H, H)" parameters for scale_model / translate_model.
    # Stored as (in, out) matmul weights (== PyTorch Linear weight transposed).
    w_scale = jax.random.normal(k_ws, (H, H), dtype=jnp.float32) * 0.1
    b_scale = jax.random.normal(k_bs, (1, H), dtype=jnp.float32) * 0.1
    w_trans = jax.random.normal(k_wt, (H, H), dtype=jnp.float32) * 0.1
    b_trans = jax.random.normal(k_bt, (1, H), dtype=jnp.float32) * 0.1

    # Seeded shuffle indices (stand-in for torch.rand(D, generator).argsort()).
    perm = jax.random.permutation(k_perm, D)

    # Fuse the two Linears into one wide matmul; weight pre-cast to bf16 once
    # (MXU-native dtype), bias stays f32 (added after the f32 accumulation).
    w_cat_f32 = jnp.concatenate([w_scale, w_trans], axis=1)
    w_cat = w_cat_f32.astype(jnp.bfloat16)
    b_cat = jnp.concatenate([b_scale, b_trans], axis=1)

    y = invertable_scale_and_translate_forward(x, w_cat, b_cat, perm)
    y = jax.block_until_ready(y)
    assert y.shape == x.shape

    # Reference matched to the kernel's numerics (bf16 matmul operands, f32 acc).
    y_ref = _reference_forward(x, w_cat, b_cat, perm)
    assert jnp.allclose(y, y_ref, atol=1e-4, rtol=1e-4), \
        float(jnp.max(jnp.abs(y - y_ref)))

    # Loose sanity check against the pure-f32 module semantics.
    y_f32 = _reference_forward(x, w_cat_f32, b_cat, perm)
    assert jnp.allclose(y, y_f32, atol=5e-2, rtol=5e-2)

    print("KERNEL_OK")
</pallas_src>

<mosaic_0001>
module attributes {stable_mosaic.version = 11 : i64} {
  func.func @_coupling_kernel(%arg0: i32, %arg1: memref<8x32xf32, #tpu.memory_space<vmem>>, %arg2: memref<16x32xbf16, #tpu.memory_space<vmem>>, %arg3: memref<1x32xf32, #tpu.memory_space<vmem>>, %arg4: memref<1x32xi32, #tpu.memory_space<vmem>>, %arg5: memref<8x32xf32, #tpu.memory_space<vmem>>) attributes {dimension_semantics = [#tpu.dimension_semantics<parallel>], iteration_bounds = array<i64: 2>, scalar_prefetch = 0 : i64, scratch_operands = 0 : i64, tpu.core_type = #tpu.core_type<tc>, window_params = [{transform_indices = @transform_0, window_bounds = array<i64: 8, 32>}, {pipeline_mode = #tpu.pipeline_mode<synchronous>, transform_indices = @transform_1, window_bounds = array<i64: 16, 32>}, {pipeline_mode = #tpu.pipeline_mode<synchronous>, transform_indices = @transform_2, window_bounds = array<i64: 1, 32>}, {pipeline_mode = #tpu.pipeline_mode<synchronous>, transform_indices = @transform_3, window_bounds = array<i64: 1, 32>}, {transform_indices = @transform_4, window_bounds = array<i64: 8, 32>}]} {
    %c0 = arith.constant 0 : index
    %c0_0 = arith.constant 0 : index
    %0 = vector.load %arg1[%c0, %c0_0] : memref<8x32xf32, #tpu.memory_space<vmem>>, vector<8x16xf32>
    %c0_1 = arith.constant 0 : index
    %c16 = arith.constant 16 : index
    %1 = vector.load %arg1[%c0_1, %c16] : memref<8x32xf32, #tpu.memory_space<vmem>>, vector<8x16xf32>
    %2 = arith.truncf %0 : vector<8x16xf32> to vector<8x16xbf16>
    %c0_2 = arith.constant 0 : index
    %c0_3 = arith.constant 0 : index
    %3 = vector.load %arg2[%c0_2, %c0_3] : memref<16x32xbf16, #tpu.memory_space<vmem>>, vector<16x32xbf16>
    %cst = arith.constant dense<0.000000e+00> : vector<8x32xf32>
    %4 = tpu.matmul %2, %3, %cst {dimension_numbers = #tpu.dot_dimension_numbers<[1], [0], [0], [1], [0, 0, 1, 1], [], []>} : vector<8x16xbf16>, vector<16x32xbf16>, vector<8x32xf32> -> vector<8x32xf32>
    %c0_4 = arith.constant 0 : index
    %c0_5 = arith.constant 0 : index
    %5 = vector.load %arg3[%c0_4, %c0_5] : memref<1x32xf32, #tpu.memory_space<vmem>>, vector<1x32xf32>
    %6 = vector.broadcast %5 : vector<1x32xf32> to vector<8x32xf32>
    %7 = arith.addf %4, %6 : vector<8x32xf32>
    %8 = vector.extract_strided_slice %7 {offsets = [0, 0], sizes = [8, 16], strides = [1, 1]} : vector<8x32xf32> to vector<8x16xf32>
    %9 = vector.extract_strided_slice %7 {offsets = [0, 16], sizes = [8, 16], strides = [1, 1]} : vector<8x32xf32> to vector<8x16xf32>
    %10 = arith.mulf %1, %8 : vector<8x16xf32>
    %11 = arith.addf %10, %9 : vector<8x16xf32>
    %12 = tpu.concatenate %0, %11 in 1 : vector<8x16xf32>, vector<8x16xf32> -> vector<8x32xf32>
    %c0_6 = arith.constant 0 : index
    %c0_7 = arith.constant 0 : index
    %13 = vector.load %arg4[%c0_6, %c0_7] : memref<1x32xi32, #tpu.memory_space<vmem>>, vector<1x32xi32>
    %14 = vector.shape_cast %13 : vector<1x32xi32> to vector<1x32xi32>
    %15 = vector.broadcast %14 : vector<1x32xi32> to vector<8x32xi32>
    %16 = vector.shape_cast %15 : vector<8x32xi32> to vector<8x32x1xi32>
    %17 = vector.shape_cast %16 : vector<8x32x1xi32> to vector<8x32xi32>
    %18 = tpu.dynamic_gather %12[%17] in [1] : vector<8x32xf32>, vector<8x32xi32> -> vector<8x32xf32>
    %c0_8 = arith.constant 0 : index
    %c0_9 = arith.constant 0 : index
    %19 = vector.load %arg5[%c0_8, %c0_9] : memref<8x32xf32, #tpu.memory_space<vmem>>, vector<8x32xf32>
    tpu.vector_store %arg5[%c0_8, %c0_9], %18 {strides = array<i32>} : memref<8x32xf32, #tpu.memory_space<vmem>>, vector<8x32xf32>,
    return
  }
  func.func @transform_0(%arg0: i32) -> (i32, i32) {
    %c0_i32 = arith.constant 0 : i32
    %c0_i32_0 = arith.constant 0 : i32
    return %arg0, %c0_i32 : i32, i32
  }
  func.func @transform_1(%arg0: i32) -> (i32, i32) {
    %c0_i32 = arith.constant 0 : i32
    %c0_i32_0 = arith.constant 0 : i32
    %c0_i32_1 = arith.constant 0 : i32
    return %c0_i32, %c0_i32_0 : i32, i32
  }
  func.func @transform_2(%arg0: i32) -> (i32, i32) {
    %c0_i32 = arith.constant 0 : i32
    %c0_i32_0 = arith.constant 0 : i32
    %c0_i32_1 = arith.constant 0 : i32
    return %c0_i32, %c0_i32_0 : i32, i32
  }
  func.func @transform_3(%arg0: i32) -> (i32, i32) {
    %c0_i32 = arith.constant 0 : i32
    %c0_i32_0 = arith.constant 0 : i32
    %c0_i32_1 = arith.constant 0 : i32
    return %c0_i32, %c0_i32_0 : i32, i32
  }
  func.func @transform_4(%arg0: i32) -> (i32, i32) {
    %c0_i32 = arith.constant 0 : i32
    %c0_i32_0 = arith.constant 0 : i32
    return %arg0, %c0_i32 : i32, i32
  }
}

module attributes {stable_mosaic.version = 11 : i64} {
  func.func @_coupling_kernel(%arg0: i32, %arg1: memref<8x32xf32, #tpu.memory_space<vmem>>, %arg2: memref<16x32xbf16, #tpu.memory_space<vmem>>, %arg3: memref<1x32xf32, #tpu.memory_space<vmem>>, %arg4: memref<1x32xi32, #tpu.memory_space<vmem>>, %arg5: memref<8x32xf32, #tpu.memory_space<vmem>>) attributes {dimension_semantics = [#tpu.dimension_semantics<parallel>], iteration_bounds = array<i64: 2>, scalar_prefetch = 0 : i64, scratch_operands = 0 : i64, tpu.core_type = #tpu.core_type<tc>, window_params = [{transform_indices = @transform_0, window_bounds = array<i64: 8, 32>}, {pipeline_mode = #tpu.pipeline_mode<synchronous>, transform_indices = @transform_1, window_bounds = array<i64: 16, 32>}, {pipeline_mode = #tpu.pipeline_mode<synchronous>, transform_indices = @transform_2, window_bounds = array<i64: 1, 32>}, {pipeline_mode = #tpu.pipeline_mode<synchronous>, transform_indices = @transform_3, window_bounds = array<i64: 1, 32>}, {transform_indices = @transform_4, window_bounds = array<i64: 8, 32>}]} {
    %c0 = arith.constant 0 : index
    %c0_0 = arith.constant 0 : index
    %0 = vector.load %arg1[%c0, %c0_0] : memref<8x32xf32, #tpu.memory_space<vmem>>, vector<8x16xf32>
    %c0_1 = arith.constant 0 : index
    %c16 = arith.constant 16 : index
    %1 = vector.load %arg1[%c0_1, %c16] : memref<8x32xf32, #tpu.memory_space<vmem>>, vector<8x16xf32>
    %2 = arith.truncf %0 : vector<8x16xf32> to vector<8x16xbf16>
    %c0_2 = arith.constant 0 : index
    %c0_3 = arith.constant 0 : index
    %3 = vector.load %arg2[%c0_2, %c0_3] : memref<16x32xbf16, #tpu.memory_space<vmem>>, vector<16x32xbf16>
    %cst = arith.constant dense<0.000000e+00> : vector<8x32xf32>
    %4 = tpu.matmul %2, %3, %cst {dimension_numbers = #tpu.dot_dimension_numbers<[1], [0], [0], [1], [0, 0, 1, 1], [], []>} : vector<8x16xbf16>, vector<16x32xbf16>, vector<8x32xf32> -> vector<8x32xf32>
    %c0_4 = arith.constant 0 : index
    %c0_5 = arith.constant 0 : index
    %5 = vector.load %arg3[%c0_4, %c0_5] : memref<1x32xf32, #tpu.memory_space<vmem>>, vector<1x32xf32>
    %6 = vector.broadcast %5 : vector<1x32xf32> to vector<8x32xf32>
    %7 = arith.addf %4, %6 : vector<8x32xf32>
    %8 = vector.extract_strided_slice %7 {offsets = [0, 0], sizes = [8, 16], strides = [1, 1]} : vector<8x32xf32> to vector<8x16xf32>
    %9 = vector.extract_strided_slice %7 {offsets = [0, 16], sizes = [8, 16], strides = [1, 1]} : vector<8x32xf32> to vector<8x16xf32>
    %10 = arith.mulf %1, %8 : vector<8x16xf32>
    %11 = arith.addf %10, %9 : vector<8x16xf32>
    %12 = tpu.concatenate %0, %11 in 1 : vector<8x16xf32>, vector<8x16xf32> -> vector<8x32xf32>
    %c0_6 = arith.constant 0 : index
    %c0_7 = arith.constant 0 : index
    %13 = vector.load %arg5[%c0_6, %c0_7] : memref<8x32xf32, #tpu.memory_space<vmem>>, vector<8x32xf32>
    tpu.vector_store %arg5[%c0_6, %c0_7], %12 {strides = array<i32>} : memref<8x32xf32, #tpu.memory_space<vmem>>, vector<8x32xf32>,
    return
  }
  func.func @transform_0(%arg0: i32) -> (i32, i32) {
    %c0_i32 = arith.constant 0 : i32
    %c0_i32_0 = arith.constant 0 : i32
    return %arg0, %c0_i32 : i32, i32
  }
  func.func @transform_1(%arg0: i32) -> (i32, i32) {
    %c0_i32 = arith.constant 0 : i32
    %c0_i32_0 = arith.constant 0 : i32
    %c0_i32_1 = arith.constant 0 : i32
    return %c0_i32, %c0_i32_0 : i32, i32
  }
  func.func @transform_2(%arg0: i32) -> (i32, i32) {
    %c0_i32 = arith.constant 0 : i32
    %c0_i32_0 = arith.constant 0 : i32
    %c0_i32_1 = arith.constant 0 : i32
    return %c0_i32, %c0_i32_0 : i32, i32
  }
  func.func @transform_3(%arg0: i32) -> (i32, i32) {
    %c0_i32 = arith.constant 0 : i32
    %c0_i32_0 = arith.constant 0 : i32
    %c0_i32_1 = arith.constant 0 : i32
    return %c0_i32, %c0_i32_0 : i32, i32
  }
  func.func @transform_4(%arg0: i32) -> (i32, i32) {
    %c0_i32 = arith.constant 0 : i32
    %c0_i32_0 = arith.constant 0 : i32
    return %arg0, %c0_i32 : i32, i32
  }
}

</mosaic_0001>

<llo_original>
// kernel: _forward_impl.1
$region0: #{_forward_impl.1}
  #allocation0 [shape = 'u32[]', space=smem, size = 0x4, offset = 0x4, fixed_abs, tag = 'smem constant byte address 0x4 - core index']
  #allocation1 [shape = 'u32[144,128]{1,0:T(1,128)}', space=vmem, size = 0x12000, scoped, tag = 'internal scratch']
  %s0 = inlined_call_operand.hbm [shape: f32[16,32], index: 0, kind: input, shape index: {}]
  %s1 = inlined_call_operand.hbm [shape: bf16[16,32], index: 1, kind: input, shape index: {}]
  %s2 = inlined_call_operand.vmem [shape: f32[1,32], index: 2, kind: input, shape index: {}]
  %s3 = inlined_call_operand.vmem [shape: s32[1,32], index: 3, kind: input, shape index: {}]
  %s4 = inlined_call_operand.hbm [shape: f32[16,32], index: 4, kind: output, shape index: {}]
  %s5 = sld [smem:[#allocation0]]
  $region57: #{_forward_impl.1} parent=0
    _
  %s7 = ssub.s32 1, %s5
  %s8 = scalar_select 0, %s7, %s5
  $region1: #{_forward_impl.1} parent=0
    #allocation2 [shape = 'u8[8192]{0}', space=vmem, size = 0x2000, scoped, tag = 'input window, operand 0']
    #allocation3 [shape = 's32[2]{0}', space=sflag, size = 0x8, scoped, tag = 'scoped memory for _forward_impl.1']
    #allocation4 [shape = 's32[2]{0}', space=sflag, size = 0x8, scoped, tag = 'scoped memory for _forward_impl.1']
    #allocation5 [shape = 'u8[4096]{0}', space=vmem, size = 0x1000, scoped, tag = 'input window, operand 1, single buffered']
    #allocation6 [shape = 's32[1]{0}', space=sflag, size = 0x4, scoped, tag = 'scoped memory for _forward_impl.1']
    #allocation7 [shape = 'u8[8192]{0}', space=vmem, size = 0x2000, scoped, tag = 'output window, operand 0']
    %9 = vsyncpa [#allocation3], 0
    %s10 = scalar_lea.sflag [#allocation3], 1
    %11 = vsyncpa %s10, 0
    %12 = vsyncpa [#allocation6], 0
    %13 = vsyncpa [#allocation4], 0
    %s14 = scalar_lea.sflag [#allocation4], 1
    %15 = vsyncpa %s14, 0
    loop: start=0, step=1, limit=4
    $region2: #{_forward_impl.1} parent=1 // loop_pre_header
      _
    $region3: #{_forward_impl.1} parent=1 // loop_header
      %s17 = sphi 0, %s21
      %p18 = scmp.ge.s32.totalorder %s17, 4
      %s27 = sphi 0, %s29
      %s30 = sphi 0, %s27
      %s31 = sphi 0, %s30
      %s47 = sphi 0, %s31
      %s51 = sphi 0, %s51
      %s53 = sphi 0, %s51
      %s54 = sphi 0, %s53
      %s68 = sphi 0, %s54
      %s72 = sphi 0, %s72
      %s74 = sphi 0, %s72
      %s75 = sphi 0, %s74
      %s89 = sphi 0, %s75
      %s93 = sphi 0, %s93
      %s95 = sphi 0, %s93
      %s96 = sphi 0, %s95
      %s110 = sphi 0, %s96
      %s116 = sphi 0, %s118
      %s119 = sphi 0, %s116
      %s120 = sphi 0, %s119
      %s136 = sphi 0, %s120
    $region4: #{_forward_impl.1} parent=1 // loop_header_branch
      %20 = sbr.rel (%p18) target = $region8
    $region5: #{_forward_impl.1} parent=1 // loop_body
      %s22 = ssub.s32 %s17, 1
      %s23 = ssub.s32 %s17, 2
      %s24 = sadd.s32 %s17, 1
      %s25 = ssub.s32 %s17, %s24
      %p26 = scmp.eq.s32.totalorder %s25, 0
      %s28 = sadd.s32 %s27, 1
      %s29 = scalar_select %p26, %s27, %s28
      %p32 = pneg %p26
      %p33 = scmp.eq.s32.totalorder %s17, 1
      %p34 = por %p32, %p33
      %p35 = scmp.ne.s32.totalorder %s27, %s30
      %p36 = scmp.eq.s32.totalorder %s17, 0
      %p37 = por %p35, %p36
      %p38 = scmp.ne.s32.totalorder %s27, %s30
      %p39 = scmp.eq.s32.totalorder %s22, 1
      %p40 = por %p38, %p39
      %p41 = scmp.ne.s32.totalorder %s30, %s31
      %p42 = scmp.eq.s32.totalorder %s22, 0
      %p43 = por %p41, %p42
      %p44 = scmp.ne.s32.totalorder %s30, %s31
      %p45 = scmp.eq.s32.totalorder %s23, 1
      %p46 = por %p44, %p45
      %p48 = scmp.ne.s32.totalorder %s31, %s47
      %p49 = scmp.eq.s32.totalorder %s23, 0
      %p50 = por %p48, %p49
      %s52 = sadd.s32 %s51, 1
      %p55 = scmp.eq.s32.totalorder %s17, 1
      %p56 = scmp.ne.s32.totalorder %s51, %s53
      %p57 = scmp.eq.s32.totalorder %s17, 0
      %p58 = por %p56, %p57
      %p59 = scmp.ne.s32.totalorder %s51, %s53
      %p60 = scmp.eq.s32.totalorder %s22, 1
      %p61 = por %p59, %p60
      %p62 = scmp.ne.s32.totalorder %s53, %s54
      %p63 = scmp.eq.s32.totalorder %s22, 0
      %p64 = por %p62, %p63
      %p65 = scmp.ne.s32.totalorder %s53, %s54
      %p66 = scmp.eq.s32.totalorder %s23, 1
      %p67 = por %p65, %p66
      %p69 = scmp.ne.s32.totalorder %s54, %s68
      %p70 = scmp.eq.s32.totalorder %s23, 0
      %p71 = por %p69, %p70
      %s73 = sadd.s32 %s72, 1
      %p76 = scmp.eq.s32.totalorder %s17, 1
      %p77 = scmp.ne.s32.totalorder %s72, %s74
      %p78 = scmp.eq.s32.totalorder %s17, 0
      %p79 = por %p77, %p78
      %p80 = scmp.ne.s32.totalorder %s72, %s74
      %p81 = scmp.eq.s32.totalorder %s22, 1
      %p82 = por %p80, %p81
      %p83 = scmp.ne.s32.totalorder %s74, %s75
      %p84 = scmp.eq.s32.totalorder %s22, 0
      %p85 = por %p83, %p84
      %p86 = scmp.ne.s32.totalorder %s74, %s75
      %p87 = scmp.eq.s32.totalorder %s23, 1
      %p88 = por %p86, %p87
      %p90 = scmp.ne.s32.totalorder %s75, %s89
      %p91 = scmp.eq.s32.totalorder %s23, 0
      %p92 = por %p90, %p91
      %s94 = sadd.s32 %s93, 1
      %p97 = scmp.eq.s32.totalorder %s17, 1
      %p98 = scmp.ne.s32.totalorder %s93, %s95
      %p99 = scmp.eq.s32.totalorder %s17, 0
      %p100 = por %p98, %p99
      %p101 = scmp.ne.s32.totalorder %s93, %s95
      %p102 = scmp.eq.s32.totalorder %s22, 1
      %p103 = por %p101, %p102
      %p104 = scmp.ne.s32.totalorder %s95, %s96
      %p105 = scmp.eq.s32.totalorder %s22, 0
      %p106 = por %p104, %p105
      %p107 = scmp.ne.s32.totalorder %s95, %s96
      %p108 = scmp.eq.s32.totalorder %s23, 1
      %p109 = por %p107, %p108
      %p111 = scmp.ne.s32.totalorder %s96, %s110
      %p112 = scmp.eq.s32.totalorder %s23, 0
      %p113 = por %p111, %p112
      %s114 = ssub.s32 %s17, %s24
      %p115 = scmp.eq.s32.totalorder %s114, 0
      %s117 = sadd.s32 %s116, 1
      %s118 = scalar_select %p115, %s116, %s117
      %p121 = pneg %p115
      %p122 = scmp.eq.s32.totalorder %s17, 1
      %p123 = por %p121, %p122
      %p124 = scmp.ne.s32.totalorder %s116, %s119
      %p125 = scmp.eq.s32.totalorder %s17, 0
      %p126 = por %p124, %p125
      %p127 = scmp.ne.s32.totalorder %s116, %s119
      %p128 = scmp.eq.s32.totalorder %s22, 1
      %p129 = por %p127, %p128
      %p130 = scmp.ne.s32.totalorder %s119, %s120
      %p131 = scmp.eq.s32.totalorder %s22, 0
      %p132 = por %p130, %p131
      %p133 = scmp.ne.s32.totalorder %s119, %s120
      %p134 = scmp.eq.s32.totalorder %s23, 1
      %p135 = por %p133, %p134
      %p137 = scmp.ne.s32.totalorder %s120, %s136
      %p138 = scmp.eq.s32.totalorder %s23, 0
      %p139 = por %p137, %p138
      %p140 = scmp.le.s32.totalorder 1, %s17
      %p141 = scmp.lt.s32.totalorder %s17, 3
      %p142 = pnand %p140, %p141
      %p143 = pneg %p142
      // Predicated region
      $region9: #{_forward_impl.1} parent=5 // pred_check
        _
      $region10: #{_forward_impl.1} parent=5 // pred_check_branch
        %145 = sbr.rel (%p142) target = $region12
      $region11: #{_forward_impl.1} parent=5 // pred_region
        %s146 = ssub.s32 %s17, 1
        // Predicated region
        $region13: #{_forward_impl.1} parent=11 // pred_check
          %p147 = pneg %p64
        $region14: #{_forward_impl.1} parent=11 // pred_check_branch
          %149 = sbr.rel (%p147) target = $region16
        $region15: #{_forward_impl.1} parent=11 // pred_region
          %s151 = ssub.s32 128, 128
          %152 = vsyncadd [#allocation6], %s151
          %s153 = sshll.u32 [#allocation5], 4
          %s154 = int_to_ptr.vmem [resolvable:$true] %s153
          %159 = dma.hbm_to_vmem [thread:$0]  %s1, 128, %s154, [#allocation6], 64, 64, 4
        $region16: #{_forward_impl.1} parent=11 // pred_fallthru
          _
        // Predicated region
        $region17: #{_forward_impl.1} parent=11 // pred_check
          %p160 = pneg %p85
        $region18: #{_forward_impl.1} parent=11 // pred_check_branch
          %162 = sbr.rel (%p160) target = $region20
        $region19: #{_forward_impl.1} parent=11 // pred_region
          _
        $region20: #{_forward_impl.1} parent=11 // pred_fallthru
          _
        // Predicated region
        $region21: #{_forward_impl.1} parent=11 // pred_check
          %p163 = pneg %p106
        $region22: #{_forward_impl.1} parent=11 // pred_check_branch
          %165 = sbr.rel (%p163) target = $region24
        $region23: #{_forward_impl.1} parent=11 // pred_region
          _
        $region24: #{_forward_impl.1} parent=11 // pred_fallthru
          _
      $region12: #{_forward_impl.1} parent=5 // pred_fallthru
        _
      %p166 = scmp.lt.s32.totalorder %s17, 2
      // Predicated region
      $region25: #{_forward_impl.1} parent=5 // pred_check
        %p167 = pneg %p166
      $region26: #{_forward_impl.1} parent=5 // pred_check_branch
        %169 = sbr.rel (%p167) target = $region28
      $region27: #{_forward_impl.1} parent=5 // pred_region
        // Predicated region
        $region29: #{_forward_impl.1} parent=27 // pred_check
          %p170 = pneg %p37
        $region30: #{_forward_impl.1} parent=27 // pred_check_branch
          %172 = sbr.rel (%p170) target = $region32
        $region31: #{_forward_impl.1} parent=27 // pred_region
          %s173 = sand.u32 %s27, 1
          %s174 = scalar_lea.sflag [#allocation3], %s173
          %s175 = sand.u32 %s27, 1
          %s176 = smul.addr %s175, 8
          %s177 = scalar_lea.vmem [#allocation2], %s176
          %s179 = ssub.s32 128, 128
          %180 = vsyncadd %s174, %s179
          %s181 = smul.addr %s17, 128
          %s182 = scalar_lea.hbm %s0, %s181
          %s184 = sshll.u32 %s177, 4
          %s185 = int_to_ptr.vmem [resolvable:$true] %s184
          %187 = dma.hbm_to_vmem [thread:$0]  %s182, 128, %s185, %s174
        $region32: #{_forward_impl.1} parent=27 // pred_fallthru
          _
      $region28: #{_forward_impl.1} parent=5 // pred_fallthru
        _
      %p188 = scmp.le.s32.totalorder 1, %s17
      %p189 = scmp.lt.s32.totalorder %s17, 3
      %p190 = pnand %p188, %p189
      %p191 = pneg %p190
      // Predicated region
      $region33: #{_forward_impl.1} parent=5 // pred_check
        _
      $region34: #{_forward_impl.1} parent=5 // pred_check_branch
        %193 = sbr.rel (%p190) target = $region36
      $region35: #{_forward_impl.1} parent=5 // pred_region
        %s194 = ssub.s32 %s17, 1
        %s195 = sand.u32 %s30, 1
        %s196 = scalar_lea.sflag [#allocation3], %s195
        %s197 = sand.u32 %s30, 1
        %s198 = smul.addr %s197, 8
        %s199 = scalar_lea.vmem [#allocation2], %s198
        // Predicated region
        $region37: #{_forward_impl.1} parent=35 // pred_check
          %p200 = pneg %p43
        $region38: #{_forward_impl.1} parent=35 // pred_check_branch
          %202 = sbr.rel (%p200) target = $region40
        $region39: #{_forward_impl.1} parent=35 // pred_region
          %203 = dma.done %s196, 128
        $region40: #{_forward_impl.1} parent=35 // pred_fallthru
          _
        // Predicated region
        $region41: #{_forward_impl.1} parent=35 // pred_check
          %p204 = pneg %p64
        $region42: #{_forward_impl.1} parent=35 // pred_check_branch
          %206 = sbr.rel (%p204) target = $region44
        $region43: #{_forward_impl.1} parent=35 // pred_region
          %207 = dma.done [#allocation6], 128
        $region44: #{_forward_impl.1} parent=35 // pred_fallthru
          _
        %s208 = sand.u32 %s30, 1
        %s209 = scalar_lea.sflag [#allocation3], %s208
        %s210 = sand.u32 %s30, 1
        %s211 = smul.addr %s210, 8
        %s212 = scalar_lea.vmem [#allocation2], %s211
        %p213 = pneg %p43
        %p214 = pneg %p40
        %p215 = pneg %p64
        %p216 = pneg %p61
        %p217 = pneg %p85
        %p218 = pneg %p82
        %p219 = pneg %p106
        %p220 = pneg %p103
        %p221 = pneg %p132
        %p222 = pneg %p129
        %s223 = sand.u32 %s119, 1
        %s224 = scalar_lea.sflag [#allocation4], %s223
        %s225 = sand.u32 %s119, 1
        %s226 = smul.addr %s225, 8
        %s227 = scalar_lea.vmem [#allocation7], %s226
        %v229 = vld [vmem:[%s199] sm:$0xff]
        %v230 = vpack.c.bf16 %v229, %v229
        %v231 = vld [vmem:[#allocation5] sm:$0xf]
        %v232 = vld [vmem:[#allocation5 + $0x4] sm:$0xf]
        %v233 = vld [vmem:[%s2] sm:$0x1]
        %v235 = vlaneseq
        %v236 = vshrl.u32 %v235, 7
        %v237 = vsub.s32 0, %v236
        %v238 = vrot.slane %v233, %v237
        %v242 = vunpack.c.l.b16 %v231
        %v243 = vunpack.c.l.b16 %v232
        %v244 = vpack.c.b16 %v243, %v242
        %vm246 = vcmask 130048
        %v248 = vsel %vm246, %v230, 0
        %250 = vmatprep.subr.bf16.mxu0 0
        %251 = vmatpush1.bf16.msra.mxu0 %v244
        %252 = vmatprep.subr.bf16.mxu0 0
        %253 = vmatpush1.bf16.msra.mxu0 0
        %254 = vmatprep.subr.bf16.mxu0 0
        %255 = vmatpush1.bf16.msra.mxu0 0
        %256 = vmatprep.subr.bf16.mxu0 0
        %257 = vmatpush1.bf16.msra.mxu0 0
        %258 = vmatprep.subr.bf16.mxu0 0
        %259 = vmatpush1.bf16.msra.mxu0 0
        %260 = vmatprep.subr.bf16.mxu0 0
        %261 = vmatpush1.bf16.msra.mxu0 0
        %262 = vmatprep.subr.bf16.mxu0 0
        %263 = vmatpush1.bf16.msra.mxu0 0
        %264 = vmatprep.subr.bf16.mxu0 0
        %265 = vmatpush1.bf16.msra.mxu0 0
        %266 = vmatprep.subr.bf16.mxu0 0
        %267 = vmatpush1.bf16.msra.mxu0 0
        %268 = vmatprep.subr.bf16.mxu0 0
        %269 = vmatpush1.bf16.msra.mxu0 0
        %270 = vmatprep.subr.bf16.mxu0 0
        %271 = vmatpush1.bf16.msra.mxu0 0
        %272 = vmatprep.subr.bf16.mxu0 0
        %273 = vmatpush1.bf16.msra.mxu0 0
        %274 = vmatprep.subr.bf16.mxu0 0
        %275 = vmatpush1.bf16.msra.mxu0 0
        %276 = vmatprep.subr.bf16.mxu0 0
        %277 = vmatpush1.bf16.msra.mxu0 0
        %278 = vmatprep.subr.bf16.mxu0 0
        %279 = vmatpush1.bf16.msra.mxu0 0
        %280 = vmatprep.subr.bf16.mxu0 0
        %281 = vmatpush1.bf16.msra.mxu0 0
        %282 = vmatprep.mubr.bf16.mxu0 0
        %283 = vmatmul.mubr.bf16.gmra.mrb[0].mxu0 %v248
        %v284 = vpop.f32.mrb[0].mxu0
        %v285 = vadd.f32 %v238, %v284
        %v286 = vpop.f32.mrb[0].mxu0
        %v287 = vpop.f32.mrb[0].mxu0
        %v288 = vpop.f32.mrb[0].mxu0
        %289 = vdwg.mxu0
        %291 = vrot.lane.b32.xlu0 %v285, 16
        %v292 = vpop.permute.xlu0 %291
        %v294 = vmul.f32 %v229, %v292
        %v295 = vadd.f32 %v294, %v285
        %v296 = vsel %vm246, %v229, %v295
        %v297 = vld [vmem:[%s3] sm:$0x1]
        %v298 = vlaneseq
        %v299 = vshrl.u32 %v298, 7
        %v300 = vsub.s32 0, %v299
        %v301 = vrot.slane %v297, %v300
        %302 = vset.pattern.permute.xlu0 %v301
        %303 = vperm.xlu0 %302, %v296
        %v304 = vpop.permute.xlu0 %303
        %vm305 = vcmask 261120
        %306 = vst.msk [vmem:[%s227] sm:$0xff] %vm305, %v304
        %s307 = sand.u32 %s119, 1
        %s308 = scalar_lea.sflag [#allocation4], %s307
        %s309 = sand.u32 %s119, 1
        %s310 = smul.addr %s309, 8
        %s311 = scalar_lea.vmem [#allocation7], %s310
        // Predicated region
        $region45: #{_forward_impl.1} parent=35 // pred_check
          %p312 = pneg %p129
        $region46: #{_forward_impl.1} parent=35 // pred_check_branch
          %314 = sbr.rel (%p312) target = $region48
        $region47: #{_forward_impl.1} parent=35 // pred_region
          %s316 = ssub.s32 128, 128
          %317 = vsyncadd %s308, %s316
          %s318 = smul.addr %s22, 128
          %s319 = scalar_lea.hbm %s4, %s318
          %s321 = sshll.u32 %s311, 4
          %s322 = int_to_ptr.vmem [resolvable:$true] %s321
          %324 = dma.vmem_to_hbm [thread:$0]  %s322, 128, %s319, %s308
        $region48: #{_forward_impl.1} parent=35 // pred_fallthru
          _
      $region36: #{_forward_impl.1} parent=5 // pred_fallthru
        _
      %p325 = scmp.le.s32.totalorder 2, %s17
      // Predicated region
      $region49: #{_forward_impl.1} parent=5 // pred_check
        %p326 = pneg %p325
      $region50: #{_forward_impl.1} parent=5 // pred_check_branch
        %328 = sbr.rel (%p326) target = $region52
      $region51: #{_forward_impl.1} parent=5 // pred_region
        %s329 = ssub.s32 %s17, 2
        // Predicated region
        $region53: #{_forward_impl.1} parent=51 // pred_check
          %p330 = pneg %p135
        $region54: #{_forward_impl.1} parent=51 // pred_check_branch
          %332 = sbr.rel (%p330) target = $region56
        $region55: #{_forward_impl.1} parent=51 // pred_region
          %s333 = sand.u32 %s120, 1
          %s334 = scalar_lea.sflag [#allocation4], %s333
          %s335 = sand.u32 %s120, 1
          %s336 = smul.addr %s335, 8
          %s337 = scalar_lea.vmem [#allocation7], %s336
          %338 = dma.done %s334, 128
        $region56: #{_forward_impl.1} parent=51 // pred_fallthru
          _
      $region52: #{_forward_impl.1} parent=5 // pred_fallthru
        _
    $region6: #{_forward_impl.1} parent=1 // loop_footer
      %s21 = sadd.s32 1, %s17
    $region7: #{_forward_impl.1} parent=1 // loop_footer_branch
      %16 = sbr.rel target = $region3
    $region8: #{_forward_impl.1} parent=1 // loop_exit
      _
    %339 = vsyncpa [#allocation3], 1
    %s340 = scalar_lea.sflag [#allocation3], 1
    %341 = vsyncpa %s340, 1
    %342 = vsyncpa [#allocation6], 1
    %343 = vsyncpa [#allocation4], 1
    %s344 = scalar_lea.sflag [#allocation4], 1
    %345 = vsyncpa %s344, 1

// kernel: _forward_impl.1
$region0: #{_forward_impl.1}
  #allocation0 [shape = 'u32[]', space=smem, size = 0x4, offset = 0x4, fixed_abs, tag = 'smem constant byte address 0x4 - core index']
  #allocation1 [shape = 'u32[144,128]{1,0:T(1,128)}', space=vmem, size = 0x12000, scoped, tag = 'internal scratch']
  %s0 = inlined_call_operand.hbm [shape: f32[16,32], index: 0, kind: input, shape index: {}]
  %s1 = inlined_call_operand.hbm [shape: bf16[16,32], index: 1, kind: input, shape index: {}]
  %s2 = inlined_call_operand.vmem [shape: f32[1,32], index: 2, kind: input, shape index: {}]
  %s3 = inlined_call_operand.vmem [shape: s32[1,32], index: 3, kind: input, shape index: {}]
  %s4 = inlined_call_operand.vmem [shape: f32[16,32], index: 4, kind: output, shape index: {}]
  %s5 = sld [smem:[#allocation0]]
  $region57: #{_forward_impl.1} parent=0
    _
  %s7 = ssub.s32 1, %s5
  %s8 = scalar_select 0, %s7, %s5
  $region1: #{_forward_impl.1} parent=0
    #allocation2 [shape = 'u8[8192]{0}', space=vmem, size = 0x2000, scoped, tag = 'input window, operand 0']
    #allocation3 [shape = 's32[2]{0}', space=sflag, size = 0x8, scoped, tag = 'scoped memory for _forward_impl.1']
    #allocation4 [shape = 'u8[4096]{0}', space=vmem, size = 0x1000, scoped, tag = 'input window, operand 1, single buffered']
    #allocation5 [shape = 's32[1]{0}', space=sflag, size = 0x4, scoped, tag = 'scoped memory for _forward_impl.1']
    %9 = vsyncpa [#allocation3], 0
    %s10 = scalar_lea.sflag [#allocation3], 1
    %11 = vsyncpa %s10, 0
    %12 = vsyncpa [#allocation5], 0
    loop: start=0, step=1, limit=4
    $region2: #{_forward_impl.1} parent=1 // loop_pre_header
      _
    $region3: #{_forward_impl.1} parent=1 // loop_header
      %s14 = sphi 0, %s18
      %p15 = scmp.ge.s32.totalorder %s14, 4
      %s24 = sphi 0, %s26
      %s27 = sphi 0, %s24
      %s28 = sphi 0, %s27
      %s44 = sphi 0, %s28
      %s48 = sphi 0, %s48
      %s50 = sphi 0, %s48
      %s51 = sphi 0, %s50
      %s65 = sphi 0, %s51
      %s69 = sphi 0, %s69
      %s71 = sphi 0, %s69
      %s72 = sphi 0, %s71
      %s86 = sphi 0, %s72
      %s90 = sphi 0, %s90
      %s92 = sphi 0, %s90
      %s93 = sphi 0, %s92
      %s107 = sphi 0, %s93
      %s113 = sphi 0, %s115
      %s116 = sphi 0, %s113
      %s117 = sphi 0, %s116
      %s133 = sphi 0, %s117
    $region4: #{_forward_impl.1} parent=1 // loop_header_branch
      %17 = sbr.rel (%p15) target = $region8
    $region5: #{_forward_impl.1} parent=1 // loop_body
      %s19 = ssub.s32 %s14, 1
      %s20 = ssub.s32 %s14, 2
      %s21 = sadd.s32 %s14, 1
      %s22 = ssub.s32 %s14, %s21
      %p23 = scmp.eq.s32.totalorder %s22, 0
      %s25 = sadd.s32 %s24, 1
      %s26 = scalar_select %p23, %s24, %s25
      %p29 = pneg %p23
      %p30 = scmp.eq.s32.totalorder %s14, 1
      %p31 = por %p29, %p30
      %p32 = scmp.ne.s32.totalorder %s24, %s27
      %p33 = scmp.eq.s32.totalorder %s14, 0
      %p34 = por %p32, %p33
      %p35 = scmp.ne.s32.totalorder %s24, %s27
      %p36 = scmp.eq.s32.totalorder %s19, 1
      %p37 = por %p35, %p36
      %p38 = scmp.ne.s32.totalorder %s27, %s28
      %p39 = scmp.eq.s32.totalorder %s19, 0
      %p40 = por %p38, %p39
      %p41 = scmp.ne.s32.totalorder %s27, %s28
      %p42 = scmp.eq.s32.totalorder %s20, 1
      %p43 = por %p41, %p42
      %p45 = scmp.ne.s32.totalorder %s28, %s44
      %p46 = scmp.eq.s32.totalorder %s20, 0
      %p47 = por %p45, %p46
      %s49 = sadd.s32 %s48, 1
      %p52 = scmp.eq.s32.totalorder %s14, 1
      %p53 = scmp.ne.s32.totalorder %s48, %s50
      %p54 = scmp.eq.s32.totalorder %s14, 0
      %p55 = por %p53, %p54
      %p56 = scmp.ne.s32.totalorder %s48, %s50
      %p57 = scmp.eq.s32.totalorder %s19, 1
      %p58 = por %p56, %p57
      %p59 = scmp.ne.s32.totalorder %s50, %s51
      %p60 = scmp.eq.s32.totalorder %s19, 0
      %p61 = por %p59, %p60
      %p62 = scmp.ne.s32.totalorder %s50, %s51
      %p63 = scmp.eq.s32.totalorder %s20, 1
      %p64 = por %p62, %p63
      %p66 = scmp.ne.s32.totalorder %s51, %s65
      %p67 = scmp.eq.s32.totalorder %s20, 0
      %p68 = por %p66, %p67
      %s70 = sadd.s32 %s69, 1
      %p73 = scmp.eq.s32.totalorder %s14, 1
      %p74 = scmp.ne.s32.totalorder %s69, %s71
      %p75 = scmp.eq.s32.totalorder %s14, 0
      %p76 = por %p74, %p75
      %p77 = scmp.ne.s32.totalorder %s69, %s71
      %p78 = scmp.eq.s32.totalorder %s19, 1
      %p79 = por %p77, %p78
      %p80 = scmp.ne.s32.totalorder %s71, %s72
      %p81 = scmp.eq.s32.totalorder %s19, 0
      %p82 = por %p80, %p81
      %p83 = scmp.ne.s32.totalorder %s71, %s72
      %p84 = scmp.eq.s32.totalorder %s20, 1
      %p85 = por %p83, %p84
      %p87 = scmp.ne.s32.totalorder %s72, %s86
      %p88 = scmp.eq.s32.totalorder %s20, 0
      %p89 = por %p87, %p88
      %s91 = sadd.s32 %s90, 1
      %p94 = scmp.eq.s32.totalorder %s14, 1
      %p95 = scmp.ne.s32.totalorder %s90, %s92
      %p96 = scmp.eq.s32.totalorder %s14, 0
      %p97 = por %p95, %p96
      %p98 = scmp.ne.s32.totalorder %s90, %s92
      %p99 = scmp.eq.s32.totalorder %s19, 1
      %p100 = por %p98, %p99
      %p101 = scmp.ne.s32.totalorder %s92, %s93
      %p102 = scmp.eq.s32.totalorder %s19, 0
      %p103 = por %p101, %p102
      %p104 = scmp.ne.s32.totalorder %s92, %s93
      %p105 = scmp.eq.s32.totalorder %s20, 1
      %p106 = por %p104, %p105
      %p108 = scmp.ne.s32.totalorder %s93, %s107
      %p109 = scmp.eq.s32.totalorder %s20, 0
      %p110 = por %p108, %p109
      %s111 = ssub.s32 %s14, %s21
      %p112 = scmp.eq.s32.totalorder %s111, 0
      %s114 = sadd.s32 %s113, 1
      %s115 = scalar_select %p112, %s113, %s114
      %p118 = pneg %p112
      %p119 = scmp.eq.s32.totalorder %s14, 1
      %p120 = por %p118, %p119
      %p121 = scmp.ne.s32.totalorder %s113, %s116
      %p122 = scmp.eq.s32.totalorder %s14, 0
      %p123 = por %p121, %p122
      %p124 = scmp.ne.s32.totalorder %s113, %s116
      %p125 = scmp.eq.s32.totalorder %s19, 1
      %p126 = por %p124, %p125
      %p127 = scmp.ne.s32.totalorder %s116, %s117
      %p128 = scmp.eq.s32.totalorder %s19, 0
      %p129 = por %p127, %p128
      %p130 = scmp.ne.s32.totalorder %s116, %s117
      %p131 = scmp.eq.s32.totalorder %s20, 1
      %p132 = por %p130, %p131
      %p134 = scmp.ne.s32.totalorder %s117, %s133
      %p135 = scmp.eq.s32.totalorder %s20, 0
      %p136 = por %p134, %p135
      %p137 = scmp.le.s32.totalorder 1, %s14
      %p138 = scmp.lt.s32.totalorder %s14, 3
      %p139 = pnand %p137, %p138
      %p140 = pneg %p139
      // Predicated region
      $region9: #{_forward_impl.1} parent=5 // pred_check
        _
      $region10: #{_forward_impl.1} parent=5 // pred_check_branch
        %142 = sbr.rel (%p139) target = $region12
      $region11: #{_forward_impl.1} parent=5 // pred_region
        %s143 = ssub.s32 %s14, 1
        // Predicated region
        $region13: #{_forward_impl.1} parent=11 // pred_check
          %p144 = pneg %p61
        $region14: #{_forward_impl.1} parent=11 // pred_check_branch
          %146 = sbr.rel (%p144) target = $region16
        $region15: #{_forward_impl.1} parent=11 // pred_region
          %s148 = ssub.s32 128, 128
          %149 = vsyncadd [#allocation5], %s148
          %s150 = sshll.u32 [#allocation4], 4
          %s151 = int_to_ptr.vmem [resolvable:$true] %s150
          %156 = dma.hbm_to_vmem [thread:$0]  %s1, 128, %s151, [#allocation5], 64, 64, 4
        $region16: #{_forward_impl.1} parent=11 // pred_fallthru
          _
        // Predicated region
        $region17: #{_forward_impl.1} parent=11 // pred_check
          %p157 = pneg %p82
        $region18: #{_forward_impl.1} parent=11 // pred_check_branch
          %159 = sbr.rel (%p157) target = $region20
        $region19: #{_forward_impl.1} parent=11 // pred_region
          _
        $region20: #{_forward_impl.1} parent=11 // pred_fallthru
          _
        // Predicated region
        $region21: #{_forward_impl.1} parent=11 // pred_check
          %p160 = pneg %p103
        $region22: #{_forward_impl.1} parent=11 // pred_check_branch
          %162 = sbr.rel (%p160) target = $region24
        $region23: #{_forward_impl.1} parent=11 // pred_region
          _
        $region24: #{_forward_impl.1} parent=11 // pred_fallthru
          _
      $region12: #{_forward_impl.1} parent=5 // pred_fallthru
        _
      %p163 = scmp.lt.s32.totalorder %s14, 2
      // Predicated region
      $region25: #{_forward_impl.1} parent=5 // pred_check
        %p164 = pneg %p163
      $region26: #{_forward_impl.1} parent=5 // pred_check_branch
        %166 = sbr.rel (%p164) target = $region28
      $region27: #{_forward_impl.1} parent=5 // pred_region
        // Predicated region
        $region29: #{_forward_impl.1} parent=27 // pred_check
          %p167 = pneg %p34
        $region30: #{_forward_impl.1} parent=27 // pred_check_branch
          %169 = sbr.rel (%p167) target = $region32
        $region31: #{_forward_impl.1} parent=27 // pred_region
          %s170 = sand.u32 %s24, 1
          %s171 = scalar_lea.sflag [#allocation3], %s170
          %s172 = sand.u32 %s24, 1
          %s173 = smul.addr %s172, 8
          %s174 = scalar_lea.vmem [#allocation2], %s173
          %s176 = ssub.s32 128, 128
          %177 = vsyncadd %s171, %s176
          %s178 = smul.addr %s14, 128
          %s179 = scalar_lea.hbm %s0, %s178
          %s181 = sshll.u32 %s174, 4
          %s182 = int_to_ptr.vmem [resolvable:$true] %s181
          %184 = dma.hbm_to_vmem [thread:$0]  %s179, 128, %s182, %s171
        $region32: #{_forward_impl.1} parent=27 // pred_fallthru
          _
      $region28: #{_forward_impl.1} parent=5 // pred_fallthru
        _
      %p185 = scmp.le.s32.totalorder 1, %s14
      %p186 = scmp.lt.s32.totalorder %s14, 3
      %p187 = pnand %p185, %p186
      %p188 = pneg %p187
      // Predicated region
      $region33: #{_forward_impl.1} parent=5 // pred_check
        _
      $region34: #{_forward_impl.1} parent=5 // pred_check_branch
        %190 = sbr.rel (%p187) target = $region36
      $region35: #{_forward_impl.1} parent=5 // pred_region
        %s191 = ssub.s32 %s14, 1
        %s192 = sand.u32 %s27, 1
        %s193 = scalar_lea.sflag [#allocation3], %s192
        %s194 = sand.u32 %s27, 1
        %s195 = smul.addr %s194, 8
        %s196 = scalar_lea.vmem [#allocation2], %s195
        // Predicated region
        $region37: #{_forward_impl.1} parent=35 // pred_check
          %p197 = pneg %p40
        $region38: #{_forward_impl.1} parent=35 // pred_check_branch
          %199 = sbr.rel (%p197) target = $region40
        $region39: #{_forward_impl.1} parent=35 // pred_region
          %200 = dma.done %s193, 128
        $region40: #{_forward_impl.1} parent=35 // pred_fallthru
          _
        // Predicated region
        $region41: #{_forward_impl.1} parent=35 // pred_check
          %p201 = pneg %p61
        $region42: #{_forward_impl.1} parent=35 // pred_check_branch
          %203 = sbr.rel (%p201) target = $region44
        $region43: #{_forward_impl.1} parent=35 // pred_region
          %204 = dma.done [#allocation5], 128
        $region44: #{_forward_impl.1} parent=35 // pred_fallthru
          _
        %s205 = sand.u32 %s27, 1
        %s206 = scalar_lea.sflag [#allocation3], %s205
        %s207 = sand.u32 %s27, 1
        %s208 = smul.addr %s207, 8
        %s209 = scalar_lea.vmem [#allocation2], %s208
        %p210 = pneg %p40
        %p211 = pneg %p37
        %p212 = pneg %p61
        %p213 = pneg %p58
        %p214 = pneg %p82
        %p215 = pneg %p79
        %p216 = pneg %p103
        %p217 = pneg %p100
        %p218 = pneg %p129
        %p219 = pneg %p126
        %p220 = scmp.lt.s32.totalorder %s19, 1
        %s221 = scalar_select %p220, %s19, 1
        %s222 = smul.addr %s221, 8
        %s223 = scalar_lea.vmem %s4, %s222
        %p224 = scmp.lt.s32.totalorder %s19, 1
        %s225 = scalar_select %p224, %s19, 1
        %s226 = smul.addr %s225, 8
        %s227 = scalar_lea.vmem %s4, %s226
        %v229 = vld [vmem:[%s196] sm:$0xff]
        %v230 = vpack.c.bf16 %v229, %v229
        %v231 = vld [vmem:[#allocation4] sm:$0xf]
        %v232 = vld [vmem:[#allocation4 + $0x4] sm:$0xf]
        %v233 = vld [vmem:[%s2] sm:$0x1]
        %v235 = vlaneseq
        %v236 = vshrl.u32 %v235, 7
        %v237 = vsub.s32 0, %v236
        %v238 = vrot.slane %v233, %v237
        %v242 = vunpack.c.l.b16 %v231
        %v243 = vunpack.c.l.b16 %v232
        %v244 = vpack.c.b16 %v243, %v242
        %vm246 = vcmask 130048
        %v248 = vsel %vm246, %v230, 0
        %250 = vmatprep.subr.bf16.mxu0 0
        %251 = vmatpush1.bf16.msra.mxu0 %v244
        %252 = vmatprep.subr.bf16.mxu0 0
        %253 = vmatpush1.bf16.msra.mxu0 0
        %254 = vmatprep.subr.bf16.mxu0 0
        %255 = vmatpush1.bf16.msra.mxu0 0
        %256 = vmatprep.subr.bf16.mxu0 0
        %257 = vmatpush1.bf16.msra.mxu0 0
        %258 = vmatprep.subr.bf16.mxu0 0
        %259 = vmatpush1.bf16.msra.mxu0 0
        %260 = vmatprep.subr.bf16.mxu0 0
        %261 = vmatpush1.bf16.msra.mxu0 0
        %262 = vmatprep.subr.bf16.mxu0 0
        %263 = vmatpush1.bf16.msra.mxu0 0
        %264 = vmatprep.subr.bf16.mxu0 0
        %265 = vmatpush1.bf16.msra.mxu0 0
        %266 = vmatprep.subr.bf16.mxu0 0
        %267 = vmatpush1.bf16.msra.mxu0 0
        %268 = vmatprep.subr.bf16.mxu0 0
        %269 = vmatpush1.bf16.msra.mxu0 0
        %270 = vmatprep.subr.bf16.mxu0 0
        %271 = vmatpush1.bf16.msra.mxu0 0
        %272 = vmatprep.subr.bf16.mxu0 0
        %273 = vmatpush1.bf16.msra.mxu0 0
        %274 = vmatprep.subr.bf16.mxu0 0
        %275 = vmatpush1.bf16.msra.mxu0 0
        %276 = vmatprep.subr.bf16.mxu0 0
        %277 = vmatpush1.bf16.msra.mxu0 0
        %278 = vmatprep.subr.bf16.mxu0 0
        %279 = vmatpush1.bf16.msra.mxu0 0
        %280 = vmatprep.subr.bf16.mxu0 0
        %281 = vmatpush1.bf16.msra.mxu0 0
        %282 = vmatprep.mubr.bf16.mxu0 0
        %283 = vmatmul.mubr.bf16.gmra.mrb[0].mxu0 %v248
        %v284 = vpop.f32.mrb[0].mxu0
        %v285 = vadd.f32 %v238, %v284
        %v286 = vpop.f32.mrb[0].mxu0
        %v287 = vpop.f32.mrb[0].mxu0
        %v288 = vpop.f32.mrb[0].mxu0
        %289 = vdwg.mxu0
        %291 = vrot.lane.b32.xlu0 %v285, 16
        %v292 = vpop.permute.xlu0 %291
        %v294 = vmul.f32 %v229, %v292
        %v295 = vadd.f32 %v294, %v285
        %v296 = vsel %vm246, %v229, %v295
        %vm297 = vcmask 261120
        %298 = vst.msk [vmem:[%s227] sm:$0xff] %vm297, %v296
        %p299 = scmp.lt.s32.totalorder %s19, 1
        %s300 = scalar_select %p299, %s19, 1
        %s301 = smul.addr %s300, 8
        %s302 = scalar_lea.vmem %s4, %s301
        // Predicated region
        $region45: #{_forward_impl.1} parent=35 // pred_check
          %p303 = pneg %p126
        $region46: #{_forward_impl.1} parent=35 // pred_check_branch
          %305 = sbr.rel (%p303) target = $region48
        $region47: #{_forward_impl.1} parent=35 // pred_region
          _
        $region48: #{_forward_impl.1} parent=35 // pred_fallthru
          _
      $region36: #{_forward_impl.1} parent=5 // pred_fallthru
        _
      %p306 = scmp.le.s32.totalorder 2, %s14
      // Predicated region
      $region49: #{_forward_impl.1} parent=5 // pred_check
        %p307 = pneg %p306
      $region50: #{_forward_impl.1} parent=5 // pred_check_branch
        %309 = sbr.rel (%p307) target = $region52
      $region51: #{_forward_impl.1} parent=5 // pred_region
        %s310 = ssub.s32 %s14, 2
        // Predicated region
        $region53: #{_forward_impl.1} parent=51 // pred_check
          %p311 = pneg %p132
        $region54: #{_forward_impl.1} parent=51 // pred_check_branch
          %313 = sbr.rel (%p311) target = $region56
        $region55: #{_forward_impl.1} parent=51 // pred_region
          %p314 = scmp.lt.s32.totalorder %s20, 1
          %s315 = scalar_select %p314, %s20, 1
          %s316 = smul.addr %s315, 8
          %s317 = scalar_lea.vmem %s4, %s316
        $region56: #{_forward_impl.1} parent=51 // pred_fallthru
          _
      $region52: #{_forward_impl.1} parent=5 // pred_fallthru
        _
    $region6: #{_forward_impl.1} parent=1 // loop_footer
      %s18 = sadd.s32 1, %s14
    $region7: #{_forward_impl.1} parent=1 // loop_footer_branch
      %13 = sbr.rel target = $region3
    $region8: #{_forward_impl.1} parent=1 // loop_exit
      _
    %318 = vsyncpa [#allocation3], 1
    %s319 = scalar_lea.sflag [#allocation3], 1
    %320 = vsyncpa %s319, 1
    %321 = vsyncpa [#allocation5], 1

</llo_original>
